<compile_context>
chip_gen: v6e
topology: v6e:2x2x1
jax: 0.10.0
libtpu: 0.0.40
codegen_flags: <defaults>
</compile_context>

<pallas_src>
import functools

import jax
import jax.numpy as jnp
from jax.experimental import pallas as pl
from jax.experimental.pallas import tpu as pltpu


HIDDEN = 64


def actor_kernel(obs_ref, w1_ref, b1_ref, w2_ref, b2_ref, w3_ref, b3_ref, out_ref):
    x = obs_ref[...]

    h1 = jnp.dot(x, w1_ref[...], preferred_element_type=jnp.float32) + b1_ref[...]
    h1 = jnp.maximum(h1, 0.0)

    h2 = jnp.dot(h1, w2_ref[...], preferred_element_type=jnp.float32) + b2_ref[...]
    h2 = jnp.maximum(h2, 0.0)

    z = jnp.dot(h2, w3_ref[...], preferred_element_type=jnp.float32) + b3_ref[...]
    # sigmoid's exp runs on the EUP (its own bundle slot) -> effectively free.
    out_ref[...] = jax.nn.sigmoid(z).astype(out_ref.dtype)


def _round_up(x, m):
    return ((x + m - 1) // m) * m


def _num_tensorcores():
    """Number of TensorCores the 'parallel' grid axis can shard across.

    v5e/v6e have 1 TC per chip; v7x has 2.  Falls back to 1, which is always
    safe: it just means one big grid step instead of two balanced ones.
    """
    try:
        info = pltpu.get_tpu_info()
    except Exception:
        return 1
    for attr in ("num_cores", "core_count", "num_tensorcores",
                 "tensorcore_count", "num_cores_per_chip", "cores_per_chip"):
        n = getattr(info, attr, None)
        if isinstance(n, int) and n > 0:
            return n
    return 1


def _choose_batch_tile(B, block_b, num_cores):
    """Pick (batch_tile, grid_steps).

    The kernel is per-grid-step-overhead bound (~0.35 us/step), so fewer,
    bigger steps win:
      * 1 TensorCore (v5e/v6e) or tiny batch -> one step if the batch fits.
      * >=2 TensorCores (v7x) -> step count kept a multiple of the core count
        so both cores get equal work on the "parallel" batch axis.
    The tile is either a multiple of 8 or the full batch (sublane rule).
    """
    block_b = max(8, _round_up(block_b, 8))
    if num_cores <= 1 or B < 8 * num_cores:
        bb = B if B <= block_b else block_b
    else:
        steps = max(num_cores, _round_up(pl.cdiv(B, block_b), num_cores))
        bb = _round_up(pl.cdiv(B, steps), 8)
        if pl.cdiv(B, bb) % num_cores != 0:
            # Nudge the tile so the step count divides evenly across cores.
            for g in range(steps, 0, -num_cores):
                cand = _round_up(pl.cdiv(B, g), 8)
                if pl.cdiv(B, cand) == g:
                    bb = cand
                    break
    return bb, pl.cdiv(B, bb)


def actor_forward(obs, params, block_b=4096, num_cores=None):
    """Run the Actor MLP forward pass with a Pallas TPU kernel.

    obs:       (B, obs_dim) float32
    params:    dict with w1 (obs_dim,64), b1 (1,64), w2 (64,64), b2 (1,64),
               w3 (64,action_dim), b3 (1,action_dim)
    block_b:   batch tile size (primary tuning knob; sweep 2048-8192).
    num_cores: TensorCores per chip (None -> auto-detect, fallback 1).
    """
    if num_cores is None:
        num_cores = _num_tensorcores()
    return _actor_forward(obs, params, block_b=int(block_b), num_cores=int(num_cores))


@functools.partial(jax.jit, static_argnames=("block_b", "num_cores"))
def _actor_forward(obs, params, *, block_b, num_cores):
    B, obs_dim = obs.shape
    action_dim = params["w3"].shape[1]

    bb, grid_b = _choose_batch_tile(B, block_b, num_cores)

    # Grid-invariant weights/biases: constant (0,0) index_map -> no re-DMA
    # between grid steps.
    w_spec = lambda shape: pl.BlockSpec(shape, lambda i: (0, 0))

    # Advisory cost estimate so XLA overlaps this kernel with surrounding ops.
    flops = 2 * B * (obs_dim * HIDDEN + HIDDEN * HIDDEN + HIDDEN * action_dim)
    transcendentals = B * action_dim  # sigmoid
    weight_bytes = 4 * (obs_dim * HIDDEN + HIDDEN
                        + HIDDEN * HIDDEN + HIDDEN
                        + HIDDEN * action_dim + action_dim)
    bytes_accessed = 4 * B * (obs_dim + action_dim) + weight_bytes
    cost = pl.CostEstimate(flops=flops,
                           transcendentals=transcendentals,
                           bytes_accessed=bytes_accessed)

    return pl.pallas_call(
        actor_kernel,
        out_shape=jax.ShapeDtypeStruct((B, action_dim), jnp.float32),
        grid_spec=pltpu.PrefetchScalarGridSpec(
            num_scalar_prefetch=0,
            grid=(grid_b,),
            in_specs=[
                pl.BlockSpec((bb, obs_dim), lambda i: (i, 0)),   # obs tile
                w_spec((obs_dim, HIDDEN)),                       # W1
                w_spec((1, HIDDEN)),                             # b1
                w_spec((HIDDEN, HIDDEN)),                        # W2
                w_spec((1, HIDDEN)),                             # b2
                w_spec((HIDDEN, action_dim)),                    # W3
                w_spec((1, action_dim)),                         # b3
            ],
            out_specs=pl.BlockSpec((bb, action_dim), lambda i: (i, 0)),
        ),
        compiler_params=pltpu.CompilerParams(
            dimension_semantics=("parallel",),
            # Explicit scoped-VMEM limit: keeps very large block_b sweeps from
            # hitting v5e's 16 MiB default; 32 MiB fits every generation.
            vmem_limit_bytes=32 * 1024 * 1024,
        ),
        cost_estimate=cost,
    )(obs, params["w1"], params["b1"], params["w2"], params["b2"],
      params["w3"], params["b3"])


def init_actor_params(key, obs_dim, action_dim):
    """Deterministic init mimicking PyTorch nn.Linear default:
    U(-1/sqrt(fan_in), 1/sqrt(fan_in)) for both weight and bias."""
    def linear(k, fan_in, fan_out):
        kw, kb = jax.random.split(k)
        bound = 1.0 / jnp.sqrt(jnp.float32(fan_in))
        w = jax.random.uniform(kw, (fan_in, fan_out), jnp.float32, -bound, bound)
        b = jax.random.uniform(kb, (1, fan_out), jnp.float32, -bound, bound)
        return w, b

    k1, k2, k3 = jax.random.split(key, 3)
    w1, b1 = linear(k1, obs_dim, HIDDEN)
    w2, b2 = linear(k2, HIDDEN, HIDDEN)
    w3, b3 = linear(k3, HIDDEN, action_dim)
    return {"w1": w1, "b1": b1, "w2": w2, "b2": b2, "w3": w3, "b3": b3}


def actor_reference(obs, p):
    """Pure-JAX reference of the PyTorch forward."""
    x = jnp.maximum(obs @ p["w1"] + p["b1"], 0.0)
    x = jnp.maximum(x @ p["w2"] + p["b2"], 0.0)
    return jax.nn.sigmoid(x @ p["w3"] + p["b3"])


if __name__ == "__main__":
    key = jax.random.PRNGKey(0)
    k_param, k_obs1, k_obs2 = jax.random.split(key, 3)

    obs_dim, action_dim = 16, 4
    params = init_actor_params(k_param, obs_dim, action_dim)

    # Case 1: default path (auto-detected core count, big tile).
    obs_a = jax.random.normal(k_obs1, (16, obs_dim), dtype=jnp.float32)
    out_a = jax.block_until_ready(actor_forward(obs_a, params))
    ref_a = actor_reference(obs_a, params)
    assert out_a.shape == (16, action_dim)
    assert jnp.allclose(out_a, ref_a, atol=1e-5, rtol=1e-5), "mismatch (default path)"

    # Case 2: batch not divisible by the tile -> Pallas partial tail block
    # (no wrapper-side padding or output slicing).
    obs_b = jax.random.normal(k_obs2, (20, obs_dim), dtype=jnp.float32)
    out_b = jax.block_until_ready(actor_forward(obs_b, params, block_b=8, num_cores=1))
    ref_b = actor_reference(obs_b, params)
    assert out_b.shape == (20, action_dim)
    assert jnp.allclose(out_b, ref_b, atol=1e-5, rtol=1e-5), "mismatch (partial block)"

    # Case 3: simulated 2-TensorCore chip (v7x-style) -> balanced even step count.
    out_c = jax.block_until_ready(actor_forward(obs_b, params, num_cores=2))
    assert out_c.shape == (20, action_dim)
    assert jnp.allclose(out_c, ref_b, atol=1e-5, rtol=1e-5), "mismatch (2-core path)"

    print("KERNEL_OK")
</pallas_src>

<mosaic_0001>
module attributes {stable_mosaic.version = 11 : i64} {
  func.func @actor_kernel(%arg0: i32, %arg1: memref<16x16xf32, #tpu.memory_space<vmem>>, %arg2: memref<16x64xf32, #tpu.memory_space<vmem>>, %arg3: memref<1x64xf32, #tpu.memory_space<vmem>>, %arg4: memref<64x64xf32, #tpu.memory_space<vmem>>, %arg5: memref<1x64xf32, #tpu.memory_space<vmem>>, %arg6: memref<64x4xf32, #tpu.memory_space<vmem>>, %arg7: memref<1x4xf32, #tpu.memory_space<vmem>>, %arg8: memref<16x4xf32, #tpu.memory_space<vmem>>) attributes {dimension_semantics = [#tpu.dimension_semantics<parallel>], iteration_bounds = array<i64: 1>, scalar_prefetch = 0 : i64, scratch_operands = 0 : i64, tpu.core_type = #tpu.core_type<tc>, window_params = [{transform_indices = @transform_0, window_bounds = array<i64: 16, 16>}, {pipeline_mode = #tpu.pipeline_mode<synchronous>, transform_indices = @transform_1, window_bounds = array<i64: 16, 64>}, {pipeline_mode = #tpu.pipeline_mode<synchronous>, transform_indices = @transform_2, window_bounds = array<i64: 1, 64>}, {pipeline_mode = #tpu.pipeline_mode<synchronous>, transform_indices = @transform_3, window_bounds = array<i64: 64, 64>}, {pipeline_mode = #tpu.pipeline_mode<synchronous>, transform_indices = @transform_4, window_bounds = array<i64: 1, 64>}, {pipeline_mode = #tpu.pipeline_mode<synchronous>, transform_indices = @transform_5, window_bounds = array<i64: 64, 4>}, {pipeline_mode = #tpu.pipeline_mode<synchronous>, transform_indices = @transform_6, window_bounds = array<i64: 1, 4>}, {transform_indices = @transform_7, window_bounds = array<i64: 16, 4>}]} {
    %c0 = arith.constant 0 : index
    %c0_0 = arith.constant 0 : index
    %0 = vector.load %arg1[%c0, %c0_0] : memref<16x16xf32, #tpu.memory_space<vmem>>, vector<16x16xf32>
    %c0_1 = arith.constant 0 : index
    %c0_2 = arith.constant 0 : index
    %1 = vector.load %arg2[%c0_1, %c0_2] : memref<16x64xf32, #tpu.memory_space<vmem>>, vector<16x64xf32>
    %cst = arith.constant dense<0.000000e+00> : vector<16x64xf32>
    %2 = tpu.matmul %0, %1, %cst {dimension_numbers = #tpu.dot_dimension_numbers<[1], [0], [0], [1], [0, 0, 1, 1], [], []>} : vector<16x16xf32>, vector<16x64xf32>, vector<16x64xf32> -> vector<16x64xf32>
    %c0_3 = arith.constant 0 : index
    %c0_4 = arith.constant 0 : index
    %3 = vector.load %arg3[%c0_3, %c0_4] : memref<1x64xf32, #tpu.memory_space<vmem>>, vector<1x64xf32>
    %4 = vector.broadcast %3 : vector<1x64xf32> to vector<16x64xf32>
    %5 = arith.addf %2, %4 : vector<16x64xf32>
    %cst_5 = arith.constant 0.000000e+00 : f32
    %6 = vector.broadcast %cst_5 : f32 to vector<16x64xf32>
    %7 = arith.maximumf %5, %6 : vector<16x64xf32>
    %c0_6 = arith.constant 0 : index
    %c0_7 = arith.constant 0 : index
    %8 = vector.load %arg4[%c0_6, %c0_7] : memref<64x64xf32, #tpu.memory_space<vmem>>, vector<64x64xf32>
    %cst_8 = arith.constant dense<0.000000e+00> : vector<16x64xf32>
    %9 = tpu.matmul %7, %8, %cst_8 {dimension_numbers = #tpu.dot_dimension_numbers<[1], [0], [0], [1], [0, 0, 1, 1], [], []>} : vector<16x64xf32>, vector<64x64xf32>, vector<16x64xf32> -> vector<16x64xf32>
    %c0_9 = arith.constant 0 : index
    %c0_10 = arith.constant 0 : index
    %10 = vector.load %arg5[%c0_9, %c0_10] : memref<1x64xf32, #tpu.memory_space<vmem>>, vector<1x64xf32>
    %11 = vector.broadcast %10 : vector<1x64xf32> to vector<16x64xf32>
    %12 = arith.addf %9, %11 : vector<16x64xf32>
    %cst_11 = arith.constant 0.000000e+00 : f32
    %13 = vector.broadcast %cst_11 : f32 to vector<16x64xf32>
    %14 = arith.maximumf %12, %13 : vector<16x64xf32>
    %c0_12 = arith.constant 0 : index
    %c0_13 = arith.constant 0 : index
    %15 = vector.load %arg6[%c0_12, %c0_13] : memref<64x4xf32, #tpu.memory_space<vmem>>, vector<64x4xf32>
    %cst_14 = arith.constant dense<0.000000e+00> : vector<16x4xf32>
    %16 = tpu.matmul %14, %15, %cst_14 {dimension_numbers = #tpu.dot_dimension_numbers<[1], [0], [0], [1], [0, 0, 1, 1], [], []>} : vector<16x64xf32>, vector<64x4xf32>, vector<16x4xf32> -> vector<16x4xf32>
    %c0_15 = arith.constant 0 : index
    %c0_16 = arith.constant 0 : index
    %17 = vector.load %arg7[%c0_15, %c0_16] : memref<1x4xf32, #tpu.memory_space<vmem>>, vector<1x4xf32>
    %18 = vector.broadcast %17 : vector<1x4xf32> to vector<16x4xf32>
    %19 = arith.addf %16, %18 : vector<16x4xf32>
    %20 = arith.negf %19 : vector<16x4xf32>
    %21 = math.exp %20 : vector<16x4xf32>
    %cst_17 = arith.constant 1.000000e+00 : f32
    %22 = vector.broadcast %cst_17 : f32 to vector<16x4xf32>
    %23 = arith.addf %22, %21 : vector<16x4xf32>
    %24 = arith.divf %22, %23 : vector<16x4xf32>
    %c0_18 = arith.constant 0 : index
    %c0_19 = arith.constant 0 : index
    %25 = vector.load %arg8[%c0_18, %c0_19] : memref<16x4xf32, #tpu.memory_space<vmem>>, vector<16x4xf32>
    tpu.vector_store %arg8[%c0_18, %c0_19], %24 {strides = array<i32>} : memref<16x4xf32, #tpu.memory_space<vmem>>, vector<16x4xf32>,
    return
  }
  func.func @transform_0(%arg0: i32) -> (i32, i32) {
    %c0_i32 = arith.constant 0 : i32
    %c0_i32_0 = arith.constant 0 : i32
    return %arg0, %c0_i32 : i32, i32
  }
  func.func @transform_1(%arg0: i32) -> (i32, i32) {
    %c0_i32 = arith.constant 0 : i32
    %c0_i32_0 = arith.constant 0 : i32
    %c0_i32_1 = arith.constant 0 : i32
    return %c0_i32, %c0_i32_0 : i32, i32
  }
  func.func @transform_2(%arg0: i32) -> (i32, i32) {
    %c0_i32 = arith.constant 0 : i32
    %c0_i32_0 = arith.constant 0 : i32
    %c0_i32_1 = arith.constant 0 : i32
    return %c0_i32, %c0_i32_0 : i32, i32
  }
  func.func @transform_3(%arg0: i32) -> (i32, i32) {
    %c0_i32 = arith.constant 0 : i32
    %c0_i32_0 = arith.constant 0 : i32
    %c0_i32_1 = arith.constant 0 : i32
    return %c0_i32, %c0_i32_0 : i32, i32
  }
  func.func @transform_4(%arg0: i32) -> (i32, i32) {
    %c0_i32 = arith.constant 0 : i32
    %c0_i32_0 = arith.constant 0 : i32
    %c0_i32_1 = arith.constant 0 : i32
    return %c0_i32, %c0_i32_0 : i32, i32
  }
  func.func @transform_5(%arg0: i32) -> (i32, i32) {
    %c0_i32 = arith.constant 0 : i32
    %c0_i32_0 = arith.constant 0 : i32
    %c0_i32_1 = arith.constant 0 : i32
    return %c0_i32, %c0_i32_0 : i32, i32
  }
  func.func @transform_6(%arg0: i32) -> (i32, i32) {
    %c0_i32 = arith.constant 0 : i32
    %c0_i32_0 = arith.constant 0 : i32
    %c0_i32_1 = arith.constant 0 : i32
    return %c0_i32, %c0_i32_0 : i32, i32
  }
  func.func @transform_7(%arg0: i32) -> (i32, i32) {
    %c0_i32 = arith.constant 0 : i32
    %c0_i32_0 = arith.constant 0 : i32
    return %arg0, %c0_i32 : i32, i32
  }
}

</mosaic_0001>

<llo_original>
// kernel: _actor_forward.1
$region0: #{_actor_forward.1}
  #allocation0 [shape = 'u32[]', space=smem, size = 0x4, offset = 0x4, fixed_abs, tag = 'smem constant byte address 0x4 - core index']
  #allocation1 [shape = 'u32[144,128]{1,0:T(1,128)}', space=vmem, size = 0x12000, scoped, tag = 'internal scratch']
  %s0 = inlined_call_operand.hbm [shape: f32[16,16], index: 0, kind: input, shape index: {}]
  %s1 = inlined_call_operand.hbm [shape: f32[16,64], index: 1, kind: input, shape index: {}]
  %s2 = inlined_call_operand.vmem [shape: f32[1,64], index: 2, kind: input, shape index: {}]
  %s3 = inlined_call_operand.vmem [shape: f32[64,64], index: 3, kind: input, shape index: {}]
  %s4 = inlined_call_operand.vmem [shape: f32[1,64], index: 4, kind: input, shape index: {}]
  %s5 = inlined_call_operand.vmem [shape: f32[64,4], index: 5, kind: input, shape index: {}]
  %s6 = inlined_call_operand.vmem [shape: f32[1,4], index: 6, kind: input, shape index: {}]
  %s7 = inlined_call_operand.vmem [shape: f32[16,4], index: 7, kind: output, shape index: {}]
  %s8 = sld [smem:[#allocation0]]
  $region46: #{_actor_forward.1} parent=0
    _
  %s10 = ssub.s32 1, %s8
  %s11 = scalar_select 0, %s10, %s8
  $region1: #{_actor_forward.1} parent=0
    #allocation2 [shape = 'u8[8192]{0}', space=vmem, size = 0x2000, scoped, tag = 'input window, operand 0, single buffered']
    #allocation3 [shape = 's32[1]{0}', space=sflag, size = 0x4, scoped, tag = 'scoped memory for _actor_forward.1']
    #allocation4 [shape = 'u8[8192]{0}', space=vmem, size = 0x2000, scoped, tag = 'input window, operand 1, single buffered']
    #allocation5 [shape = 's32[1]{0}', space=sflag, size = 0x4, scoped, tag = 'scoped memory for _actor_forward.1']
    %12 = vsyncpa [#allocation3], 0
    %13 = vsyncpa [#allocation5], 0
    // Predicated region
    $region2: #{_actor_forward.1} parent=1 // pred_check
      _
    $region3: #{_actor_forward.1} parent=1 // pred_check_branch
      %15 = sbr.rel (0) target = $region5
    $region4: #{_actor_forward.1} parent=1 // pred_region
      %s17 = ssub.s32 256, 256
      %18 = vsyncadd [#allocation3], %s17
      %s19 = sshll.u32 [#allocation2], 4
      %s20 = int_to_ptr.vmem [resolvable:$true] %s19
      %25 = dma.hbm_to_vmem [thread:$0]  %s0, 256, %s20, [#allocation3], 128, 128, 8
    $region5: #{_actor_forward.1} parent=1 // pred_fallthru
      _
    // Predicated region
    $region6: #{_actor_forward.1} parent=1 // pred_check
      _
    $region7: #{_actor_forward.1} parent=1 // pred_check_branch
      %27 = sbr.rel (0) target = $region9
    $region8: #{_actor_forward.1} parent=1 // pred_region
      %s29 = ssub.s32 256, 256
      %30 = vsyncadd [#allocation5], %s29
      %s31 = sshll.u32 [#allocation4], 4
      %s32 = int_to_ptr.vmem [resolvable:$true] %s31
      %37 = dma.hbm_to_vmem [thread:$0]  %s1, 256, %s32, [#allocation5], 128, 128, 8
    $region9: #{_actor_forward.1} parent=1 // pred_fallthru
      _
    // Predicated region
    $region10: #{_actor_forward.1} parent=1 // pred_check
      _
    $region11: #{_actor_forward.1} parent=1 // pred_check_branch
      %39 = sbr.rel (0) target = $region13
    $region12: #{_actor_forward.1} parent=1 // pred_region
      _
    $region13: #{_actor_forward.1} parent=1 // pred_fallthru
      _
    // Predicated region
    $region14: #{_actor_forward.1} parent=1 // pred_check
      _
    $region15: #{_actor_forward.1} parent=1 // pred_check_branch
      %41 = sbr.rel (0) target = $region17
    $region16: #{_actor_forward.1} parent=1 // pred_region
      _
    $region17: #{_actor_forward.1} parent=1 // pred_fallthru
      _
    // Predicated region
    $region18: #{_actor_forward.1} parent=1 // pred_check
      _
    $region19: #{_actor_forward.1} parent=1 // pred_check_branch
      %43 = sbr.rel (0) target = $region21
    $region20: #{_actor_forward.1} parent=1 // pred_region
      _
    $region21: #{_actor_forward.1} parent=1 // pred_fallthru
      _
    // Predicated region
    $region22: #{_actor_forward.1} parent=1 // pred_check
      _
    $region23: #{_actor_forward.1} parent=1 // pred_check_branch
      %45 = sbr.rel (0) target = $region25
    $region24: #{_actor_forward.1} parent=1 // pred_region
      _
    $region25: #{_actor_forward.1} parent=1 // pred_fallthru
      _
    // Predicated region
    $region26: #{_actor_forward.1} parent=1 // pred_check
      _
    $region27: #{_actor_forward.1} parent=1 // pred_check_branch
      %47 = sbr.rel (0) target = $region29
    $region28: #{_actor_forward.1} parent=1 // pred_region
      _
    $region29: #{_actor_forward.1} parent=1 // pred_fallthru
      _
    // Predicated region
    $region30: #{_actor_forward.1} parent=1 // pred_check
      _
    $region31: #{_actor_forward.1} parent=1 // pred_check_branch
      %49 = sbr.rel (0) target = $region33
    $region32: #{_actor_forward.1} parent=1 // pred_region
      %50 = dma.done [#allocation3], 256
    $region33: #{_actor_forward.1} parent=1 // pred_fallthru
      _
    // Predicated region
    $region34: #{_actor_forward.1} parent=1 // pred_check
      _
    $region35: #{_actor_forward.1} parent=1 // pred_check_branch
      %52 = sbr.rel (0) target = $region37
    $region36: #{_actor_forward.1} parent=1 // pred_region
      %53 = dma.done [#allocation5], 256
    $region37: #{_actor_forward.1} parent=1 // pred_fallthru
      _
    %v54 = vld [vmem:[#allocation2] sm:$0xff]
    %v55 = vld [vmem:[#allocation2 + $0x8] sm:$0xff]
    %v56 = vld [vmem:[#allocation4] sm:$0xff]
    %v57 = vld [vmem:[#allocation4 + $0x8] sm:$0xff]
    %v58 = vld [vmem:[%s2] sm:$0x1]
    %v60 = vlaneseq
    %v61 = vshrl.u32 %v60, 7
    %v62 = vsub.s32 0, %v61
    %v63 = vrot.slane %v58, %v62
    %vm65 = vcmask 130048
    %v67 = vsel %vm65, %v54, 0
    %v70 = vsel %vm65, %v55, 0
    %72 = vmatprep.subr.mxu0 0.0
    %73 = vmatpush1.msra.mxu0 0.0
    %74 = vmatprep.subr.mxu0 0.0
    %75 = vmatpush1.msra.mxu0 0.0
    %76 = vmatprep.subr.mxu0 0.0
    %77 = vmatpush1.msra.mxu0 0.0
    %78 = vmatprep.subr.mxu0 0.0
    %79 = vmatpush1.msra.mxu0 0.0
    %80 = vmatprep.subr.mxu0 0.0
    %81 = vmatpush1.msra.mxu0 0.0
    %82 = vmatprep.subr.mxu0 0.0
    %83 = vmatpush1.msra.mxu0 0.0
    %84 = vmatprep.subr.mxu0 0.0
    %85 = vmatpush1.msra.mxu0 0.0
    %86 = vmatprep.subr.mxu0 0.0
    %87 = vmatpush1.msra.mxu0 0.0
    %88 = vmatprep.subr.mxu0 0.0
    %89 = vmatpush1.msra.mxu0 0.0
    %90 = vmatprep.subr.mxu0 0.0
    %91 = vmatpush1.msra.mxu0 0.0
    %92 = vmatprep.subr.mxu0 0.0
    %93 = vmatpush1.msra.mxu0 0.0
    %94 = vmatprep.subr.mxu0 0.0
    %95 = vmatpush1.msra.mxu0 0.0
    %96 = vmatprep.subr.mxu0 0.0
    %97 = vmatpush1.msra.mxu0 0.0
    %98 = vmatprep.subr.mxu0 0.0
    %99 = vmatpush1.msra.mxu0 0.0
    %100 = vmatprep.subr.mxu0 0.0
    %101 = vmatpush1.msra.mxu0 %v57
    %102 = vmatprep.subr.mxu0 0.0
    %103 = vmatpush1.msra.mxu0 %v56
    %104 = vmatprep.subr.mxu0 0.0
    %105 = vmatpush2.msra.mxu0 0.0
    %106 = vmatprep.subr.mxu0 0.0
    %107 = vmatpush2.msra.mxu0 0.0
    %108 = vmatprep.subr.mxu0 0.0
    %109 = vmatpush2.msra.mxu0 0.0
    %110 = vmatprep.subr.mxu0 0.0
    %111 = vmatpush2.msra.mxu0 0.0
    %112 = vmatprep.subr.mxu0 0.0
    %113 = vmatpush2.msra.mxu0 0.0
    %114 = vmatprep.subr.mxu0 0.0
    %115 = vmatpush2.msra.mxu0 0.0
    %116 = vmatprep.subr.mxu0 0.0
    %117 = vmatpush2.msra.mxu0 0.0
    %118 = vmatprep.subr.mxu0 0.0
    %119 = vmatpush2.msra.mxu0 0.0
    %120 = vmatprep.subr.mxu0 0.0
    %121 = vmatpush2.msra.mxu0 0.0
    %122 = vmatprep.subr.mxu0 0.0
    %123 = vmatpush2.msra.mxu0 0.0
    %124 = vmatprep.subr.mxu0 0.0
    %125 = vmatpush2.msra.mxu0 0.0
    %126 = vmatprep.subr.mxu0 0.0
    %127 = vmatpush2.msra.mxu0 0.0
    %128 = vmatprep.subr.mxu0 0.0
    %129 = vmatpush2.msra.mxu0 0.0
    %130 = vmatprep.subr.mxu0 0.0
    %131 = vmatpush2.msra.mxu0 0.0
    %132 = vmatprep.subr.mxu0 0.0
    %133 = vmatpush2.msra.mxu0 0.0
    %134 = vmatprep.subr.mxu0 0.0
    %135 = vmatpush2.msra.mxu0 0.0
    %136 = vmatprep.mubr.f32.mxu0 0.0
    %137 = vmatmul.mubr.f32.gmra.mxu0 %v67
    %v138 = vpop.f32.mrf.mxu0
    %v139 = vadd.f32 %v63, %v138
    %v140 = vpop.f32.mrf.mxu0
    %141 = vmatprep.mubr.f32.mxu0 0.0
    %142 = vmatmul.mubr.f32.gmra.mxu0 %v70
    %v143 = vpop.f32.mrf.mxu0
    %v144 = vadd.f32 %v63, %v143
    %v145 = vpop.f32.mrf.mxu0
    %146 = vdwg.mxu0
    %v147 = vmax.f32 %v139, 0.0
    %v148 = vmax.f32 %v144, 0.0
    %v149 = vld [vmem:[%s3] sm:$0xff]
    %v150 = vld [vmem:[%s3 + $0x8] sm:$0xff]
    %v151 = vld [vmem:[%s3 + $0x10] sm:$0xff]
    %v152 = vld [vmem:[%s3 + $0x18] sm:$0xff]
    %v153 = vld [vmem:[%s3 + $0x20] sm:$0xff]
    %v154 = vld [vmem:[%s3 + $0x28] sm:$0xff]
    %v155 = vld [vmem:[%s3 + $0x30] sm:$0xff]
    %v156 = vld [vmem:[%s3 + $0x38] sm:$0xff]
    %v157 = vld [vmem:[%s4] sm:$0x1]
    %v159 = vlaneseq
    %v160 = vshrl.u32 %v159, 7
    %v161 = vsub.s32 0, %v160
    %v162 = vrot.slane %v157, %v161
    %vm164 = vcmask 523264
    %v166 = vsel %vm164, %v147, 0
    %v169 = vsel %vm164, %v148, 0
    %171 = vmatprep.subr.mxu0 0.0
    %172 = vmatpush1.msra.mxu0 0.0
    %173 = vmatprep.subr.mxu0 0.0
    %174 = vmatpush1.msra.mxu0 0.0
    %175 = vmatprep.subr.mxu0 0.0
    %176 = vmatpush1.msra.mxu0 0.0
    %177 = vmatprep.subr.mxu0 0.0
    %178 = vmatpush1.msra.mxu0 0.0
    %179 = vmatprep.subr.mxu0 0.0
    %180 = vmatpush1.msra.mxu0 0.0
    %181 = vmatprep.subr.mxu0 0.0
    %182 = vmatpush1.msra.mxu0 0.0
    %183 = vmatprep.subr.mxu0 0.0
    %184 = vmatpush1.msra.mxu0 0.0
    %185 = vmatprep.subr.mxu0 0.0
    %186 = vmatpush1.msra.mxu0 0.0
    %187 = vmatprep.subr.mxu0 0.0
    %188 = vmatpush1.msra.mxu0 %v156
    %189 = vmatprep.subr.mxu0 0.0
    %190 = vmatpush1.msra.mxu0 %v155
    %191 = vmatprep.subr.mxu0 0.0
    %192 = vmatpush1.msra.mxu0 %v154
    %193 = vmatprep.subr.mxu0 0.0
    %194 = vmatpush1.msra.mxu0 %v153
    %195 = vmatprep.subr.mxu0 0.0
    %196 = vmatpush1.msra.mxu0 %v152
    %197 = vmatprep.subr.mxu0 0.0
    %198 = vmatpush1.msra.mxu0 %v151
    %199 = vmatprep.subr.mxu0 0.0
    %200 = vmatpush1.msra.mxu0 %v150
    %201 = vmatprep.subr.mxu0 0.0
    %202 = vmatpush1.msra.mxu0 %v149
    %203 = vmatprep.subr.mxu0 0.0
    %204 = vmatpush2.msra.mxu0 0.0
    %205 = vmatprep.subr.mxu0 0.0
    %206 = vmatpush2.msra.mxu0 0.0
    %207 = vmatprep.subr.mxu0 0.0
    %208 = vmatpush2.msra.mxu0 0.0
    %209 = vmatprep.subr.mxu0 0.0
    %210 = vmatpush2.msra.mxu0 0.0
    %211 = vmatprep.subr.mxu0 0.0
    %212 = vmatpush2.msra.mxu0 0.0
    %213 = vmatprep.subr.mxu0 0.0
    %214 = vmatpush2.msra.mxu0 0.0
    %215 = vmatprep.subr.mxu0 0.0
    %216 = vmatpush2.msra.mxu0 0.0
    %217 = vmatprep.subr.mxu0 0.0
    %218 = vmatpush2.msra.mxu0 0.0
    %219 = vmatprep.subr.mxu0 0.0
    %220 = vmatpush2.msra.mxu0 0.0
    %221 = vmatprep.subr.mxu0 0.0
    %222 = vmatpush2.msra.mxu0 0.0
    %223 = vmatprep.subr.mxu0 0.0
    %224 = vmatpush2.msra.mxu0 0.0
    %225 = vmatprep.subr.mxu0 0.0
    %226 = vmatpush2.msra.mxu0 0.0
    %227 = vmatprep.subr.mxu0 0.0
    %228 = vmatpush2.msra.mxu0 0.0
    %229 = vmatprep.subr.mxu0 0.0
    %230 = vmatpush2.msra.mxu0 0.0
    %231 = vmatprep.subr.mxu0 0.0
    %232 = vmatpush2.msra.mxu0 0.0
    %233 = vmatprep.subr.mxu0 0.0
    %234 = vmatpush2.msra.mxu0 0.0
    %235 = vmatprep.mubr.f32.mxu0 0.0
    %236 = vmatmul.mubr.f32.gmra.mxu0 %v166
    %v237 = vpop.f32.mrf.mxu0
    %v238 = vadd.f32 %v162, %v237
    %v239 = vpop.f32.mrf.mxu0
    %240 = vmatprep.mubr.f32.mxu0 0.0
    %241 = vmatmul.mubr.f32.gmra.mxu0 %v169
    %v242 = vpop.f32.mrf.mxu0
    %v243 = vadd.f32 %v162, %v242
    %v244 = vpop.f32.mrf.mxu0
    %245 = vdwg.mxu0
    %v246 = vmax.f32 %v238, 0.0
    %v247 = vmax.f32 %v243, 0.0
    %v248 = vld [vmem:[%s5] sm:$0xff]
    %v249 = vld [vmem:[%s5 + $0x8] sm:$0xff]
    %v250 = vld [vmem:[%s5 + $0x10] sm:$0xff]
    %v251 = vld [vmem:[%s5 + $0x18] sm:$0xff]
    %v252 = vld [vmem:[%s5 + $0x20] sm:$0xff]
    %v253 = vld [vmem:[%s5 + $0x28] sm:$0xff]
    %v254 = vld [vmem:[%s5 + $0x30] sm:$0xff]
    %v255 = vld [vmem:[%s5 + $0x38] sm:$0xff]
    %v256 = vld [vmem:[%s6] sm:$0x1]
    %v258 = vlaneseq
    %v259 = vshrl.u32 %v258, 7
    %v260 = vsub.s32 0, %v259
    %v261 = vrot.slane %v256, %v260
    %v264 = vsel %vm164, %v246, 0
    %v267 = vsel %vm164, %v247, 0
    %269 = vmatprep.subr.mxu0 0.0
    %270 = vmatpush1.msra.mxu0 0.0
    %271 = vmatprep.subr.mxu0 0.0
    %272 = vmatpush1.msra.mxu0 0.0
    %273 = vmatprep.subr.mxu0 0.0
    %274 = vmatpush1.msra.mxu0 0.0
    %275 = vmatprep.subr.mxu0 0.0
    %276 = vmatpush1.msra.mxu0 0.0
    %277 = vmatprep.subr.mxu0 0.0
    %278 = vmatpush1.msra.mxu0 0.0
    %279 = vmatprep.subr.mxu0 0.0
    %280 = vmatpush1.msra.mxu0 0.0
    %281 = vmatprep.subr.mxu0 0.0
    %282 = vmatpush1.msra.mxu0 0.0
    %283 = vmatprep.subr.mxu0 0.0
    %284 = vmatpush1.msra.mxu0 0.0
    %285 = vmatprep.subr.mxu0 0.0
    %286 = vmatpush1.msra.mxu0 %v255
    %287 = vmatprep.subr.mxu0 0.0
    %288 = vmatpush1.msra.mxu0 %v254
    %289 = vmatprep.subr.mxu0 0.0
    %290 = vmatpush1.msra.mxu0 %v253
    %291 = vmatprep.subr.mxu0 0.0
    %292 = vmatpush1.msra.mxu0 %v252
    %293 = vmatprep.subr.mxu0 0.0
    %294 = vmatpush1.msra.mxu0 %v251
    %295 = vmatprep.subr.mxu0 0.0
    %296 = vmatpush1.msra.mxu0 %v250
    %297 = vmatprep.subr.mxu0 0.0
    %298 = vmatpush1.msra.mxu0 %v249
    %299 = vmatprep.subr.mxu0 0.0
    %300 = vmatpush1.msra.mxu0 %v248
    %301 = vmatprep.subr.mxu0 0.0
    %302 = vmatpush2.msra.mxu0 0.0
    %303 = vmatprep.subr.mxu0 0.0
    %304 = vmatpush2.msra.mxu0 0.0
    %305 = vmatprep.subr.mxu0 0.0
    %306 = vmatpush2.msra.mxu0 0.0
    %307 = vmatprep.subr.mxu0 0.0
    %308 = vmatpush2.msra.mxu0 0.0
    %309 = vmatprep.subr.mxu0 0.0
    %310 = vmatpush2.msra.mxu0 0.0
    %311 = vmatprep.subr.mxu0 0.0
    %312 = vmatpush2.msra.mxu0 0.0
    %313 = vmatprep.subr.mxu0 0.0
    %314 = vmatpush2.msra.mxu0 0.0
    %315 = vmatprep.subr.mxu0 0.0
    %316 = vmatpush2.msra.mxu0 0.0
    %317 = vmatprep.subr.mxu0 0.0
    %318 = vmatpush2.msra.mxu0 0.0
    %319 = vmatprep.subr.mxu0 0.0
    %320 = vmatpush2.msra.mxu0 0.0
    %321 = vmatprep.subr.mxu0 0.0
    %322 = vmatpush2.msra.mxu0 0.0
    %323 = vmatprep.subr.mxu0 0.0
    %324 = vmatpush2.msra.mxu0 0.0
    %325 = vmatprep.subr.mxu0 0.0
    %326 = vmatpush2.msra.mxu0 0.0
    %327 = vmatprep.subr.mxu0 0.0
    %328 = vmatpush2.msra.mxu0 0.0
    %329 = vmatprep.subr.mxu0 0.0
    %330 = vmatpush2.msra.mxu0 0.0
    %331 = vmatprep.subr.mxu0 0.0
    %332 = vmatpush2.msra.mxu0 0.0
    %333 = vmatprep.mubr.f32.mxu0 0.0
    %334 = vmatmul.mubr.f32.gmra.mxu0 %v264
    %v335 = vpop.f32.mrf.mxu0
    %v336 = vadd.f32 %v261, %v335
    %v337 = vpop.f32.mrf.mxu0
    %338 = vmatprep.mubr.f32.mxu0 0.0
    %339 = vmatmul.mubr.f32.gmra.mxu0 %v267
    %v340 = vpop.f32.mrf.mxu0
    %v341 = vadd.f32 %v261, %v340
    %v342 = vpop.f32.mrf.mxu0
    %343 = vdwg.mxu0
    %v344 = vxor.u32 %v336, 2147483648
    %v345 = vxor.u32 %v341, 2147483648
    %v346 = vmul.f32 %v344, 1.442695
    %v347 = vpow.pop %v346
    %v348 = vmul.f32 %v345, 1.442695
    %v349 = vpow.pop %v348
    %v350 = vadd.f32 %v347, 1.0
    %v351 = vadd.f32 %v349, 1.0
    %v352 = vrcp.pop %v350
    %v353 = vmul.f32 1.0, %v352
    %v354 = vrcp.pop %v351
    %v355 = vmul.f32 1.0, %v354
    %vm356 = vcmask 31744
    %357 = vst.msk [vmem:[%s7] sm:$0xff] %vm356, %v353
    %358 = vst.msk [vmem:[%s7 + $0x8] sm:$0xff] %vm356, %v355
    // Predicated region
    $region38: #{_actor_forward.1} parent=1 // pred_check
      _
    $region39: #{_actor_forward.1} parent=1 // pred_check_branch
      %360 = sbr.rel (0) target = $region41
    $region40: #{_actor_forward.1} parent=1 // pred_region
      _
    $region41: #{_actor_forward.1} parent=1 // pred_fallthru
      _
    // Predicated region
    $region42: #{_actor_forward.1} parent=1 // pred_check
      _
    $region43: #{_actor_forward.1} parent=1 // pred_check_branch
      %362 = sbr.rel (0) target = $region45
    $region44: #{_actor_forward.1} parent=1 // pred_region
      _
    $region45: #{_actor_forward.1} parent=1 // pred_fallthru
      _
    %363 = vsyncpa [#allocation3], 1
    %364 = vsyncpa [#allocation5], 1

</llo_original>
